<compile_context>
chip_gen: v6e
topology: v6e:2x2x1
jax: 0.10.0
libtpu: 0.0.40
codegen_flags: <defaults>
</compile_context>

<pallas_src>
import jax
import jax.numpy as jnp
from jax.experimental import pallas as pl
from jax.experimental.pallas import tpu as pltpu

NUM_ACTIONS = 4
HEAD_W = 8        # fused policy+value head width (pi: [:4], v: [4:5]), padded to 8 lanes
_MAX_BM = 2048    # batch-tile cap (amortizes per-grid-step overhead; VMEM stays tiny)


def _wnet_kernel(x_ref, h_ref,
                 w_ih_ref, w_hh_ref, b_h_ref,
                 w_p_ref, b_p_ref,
                 w_a_ref, b_a_ref,
                 w_hd_ref, b_hd_ref,
                 heads_ref, h_out_ref):
    cd = w_ih_ref.dtype  # matmul operand (compute) dtype: f32 or bf16

    # --- adaptive RNN cell: x @ W_ih + h @ W_hh + b (f32 accumulation) ---
    h_new = jnp.tanh(
        jnp.dot(x_ref[...], w_ih_ref[...], preferred_element_type=jnp.float32)
        + jnp.dot(h_ref[...], w_hh_ref[...], preferred_element_type=jnp.float32)
        + b_h_ref[...])

    # --- warp: project (hsize -> asize), adapt (asize -> hsize gate) ---
    a = jnp.tanh(
        jnp.dot(h_new.astype(cd), w_p_ref[...], preferred_element_type=jnp.float32)
        + b_p_ref[...])
    gate = jax.nn.sigmoid(
        jnp.dot(a.astype(cd), w_a_ref[...], preferred_element_type=jnp.float32)
        + b_a_ref[...])
    out = h_new * gate

    # --- fused policy/value heads: one narrow (bm, 8) store ---
    heads_ref[...] = (
        jnp.dot(out.astype(cd), w_hd_ref[...], preferred_element_type=jnp.float32)
        + b_hd_ref[...]).astype(heads_ref.dtype)
    h_out_ref[...] = h_new.astype(h_out_ref.dtype)


def _round_up(x, m):
    return ((x + m - 1) // m) * m


def _choose_tiling(B):
    """Pick (bm, grid, b_pad): minimal sublane padding, >=2 tiles for large B."""
    b8 = _round_up(max(B, 1), 8)
    n_tiles = pl.cdiv(b8, _MAX_BM)
    if b8 > 512:
        n_tiles = max(n_tiles, 2)     # keep both v7x TensorCores busy
    bm = _round_up(pl.cdiv(b8, n_tiles), 8)
    grid = pl.cdiv(b8, bm)
    b_pad = bm * grid                 # exact tiling; waste < 8 * grid rows
    return bm, grid, b_pad


def prepare_params(params, compute_dtype=jnp.float32):
    """One-time parameter prep (do NOT call per step).

    Builds the fused (hsize, 8) policy+value head and optionally casts matmul
    operands to bf16 (biases stay f32; accumulation is always f32).
    """
    hsize = params["w_pi"].shape[0]
    w_hd = jnp.zeros((hsize, HEAD_W), jnp.float32)
    w_hd = w_hd.at[:, :NUM_ACTIONS].set(params["w_pi"])
    w_hd = w_hd.at[:, NUM_ACTIONS:NUM_ACTIONS + 1].set(params["w_v"])
    b_hd = jnp.zeros((1, HEAD_W), jnp.float32)
    b_hd = b_hd.at[:, :NUM_ACTIONS].set(params["b_pi"])
    b_hd = b_hd.at[:, NUM_ACTIONS:NUM_ACTIONS + 1].set(params["b_v"])

    return {
        "w_ih":    params["w_ih"].astype(compute_dtype),
        "w_hh":    params["w_hh"].astype(compute_dtype),
        "b_h":     params["b_h"].astype(jnp.float32),
        "w_proj":  params["w_proj"].astype(compute_dtype),
        "b_proj":  params["b_proj"].astype(jnp.float32),
        "w_adapt": params["w_adapt"].astype(compute_dtype),
        "b_adapt": params["b_adapt"].astype(jnp.float32),
        "w_heads": w_hd.astype(compute_dtype),
        "b_heads": b_hd,
    }


def wnet_forward(x, hidden, prepped):
    """One WNet step.

    Args:
      x:       (B, isize)  float32 input.
      hidden:  (B, hsize)  float32 hidden state.
      prepped: dict from prepare_params().
    Returns:
      (pi, v, new_hidden) with shapes (B, 4), (B, 1), (B, hsize).
    """
    B, isize = x.shape
    hsize = hidden.shape[1]
    asize = prepped["w_proj"].shape[1]
    cd = prepped["w_ih"].dtype

    bm, grid, b_pad = _choose_tiling(B)

    xc = x.astype(cd)
    hc = hidden.astype(cd)
    if b_pad != B:
        xc = jnp.pad(xc, ((0, b_pad - B), (0, 0)))
        hc = jnp.pad(hc, ((0, b_pad - B), (0, 0)))

    batch_spec = lambda cols: pl.BlockSpec((bm, cols), lambda i: (i, 0))
    pinned = lambda shape: pl.BlockSpec(shape, lambda i: (0, 0))

    heads, h_new = pl.pallas_call(
        _wnet_kernel,
        out_shape=(
            jax.ShapeDtypeStruct((b_pad, HEAD_W), jnp.float32),
            jax.ShapeDtypeStruct((b_pad, hsize), jnp.float32),
        ),
        grid=(grid,),
        in_specs=[
            batch_spec(isize),                 # x
            batch_spec(hsize),                 # hidden
            pinned((isize, hsize)),            # w_ih
            pinned((hsize, hsize)),            # w_hh
            pinned((1, hsize)),                # b_h
            pinned((hsize, asize)),            # w_proj
            pinned((1, asize)),                # b_proj
            pinned((asize, hsize)),            # w_adapt
            pinned((1, hsize)),                # b_adapt
            pinned((hsize, HEAD_W)),           # w_heads (fused pi/v)
            pinned((1, HEAD_W)),               # b_heads
        ],
        out_specs=(
            batch_spec(HEAD_W),
            batch_spec(hsize),
        ),
        compiler_params=pltpu.CompilerParams(
            dimension_semantics=("parallel",)),
    )(xc, hc,
      prepped["w_ih"], prepped["w_hh"], prepped["b_h"],
      prepped["w_proj"], prepped["b_proj"],
      prepped["w_adapt"], prepped["b_adapt"],
      prepped["w_heads"], prepped["b_heads"])

    pi = heads[:B, :NUM_ACTIONS]
    v = heads[:B, NUM_ACTIONS:NUM_ACTIONS + 1]
    return pi, v, h_new[:B]


def init_params(key, isize, hsize, asize):
    """Deterministic synthetic parameters (Linear weights stored as (in, out))."""
    keys = jax.random.split(key, 9)
    s = 0.1
    return {
        "w_ih":    s * jax.random.normal(keys[0], (isize, hsize), jnp.float32),
        "w_hh":    s * jax.random.normal(keys[1], (hsize, hsize), jnp.float32),
        "b_h":     jnp.zeros((1, hsize), jnp.float32),
        "w_proj":  s * jax.random.normal(keys[2], (hsize, asize), jnp.float32),
        "b_proj":  jnp.zeros((1, asize), jnp.float32),
        "w_adapt": s * jax.random.normal(keys[3], (asize, hsize), jnp.float32),
        "b_adapt": jnp.zeros((1, hsize), jnp.float32),
        "w_pi":    s * jax.random.normal(keys[4], (hsize, NUM_ACTIONS), jnp.float32),
        "b_pi":    s * jax.random.normal(keys[5], (1, NUM_ACTIONS), jnp.float32),
        "w_v":     s * jax.random.normal(keys[6], (hsize, 1), jnp.float32),
        "b_v":     s * jax.random.normal(keys[7], (1, 1), jnp.float32),
    }


def _reference_forward(x, hidden, p):
    """Pure-JAX reference for correctness check."""
    h_new = jnp.tanh(x @ p["w_ih"] + hidden @ p["w_hh"] + p["b_h"])
    a = jnp.tanh(h_new @ p["w_proj"] + p["b_proj"])
    gate = jax.nn.sigmoid(a @ p["w_adapt"] + p["b_adapt"])
    out = h_new * gate
    pi = out @ p["w_pi"] + p["b_pi"]
    v = out @ p["w_v"] + p["b_v"]
    return pi, v, h_new


if __name__ == "__main__":
    B, isize, hsize, asize = 2, 16, 32, 32

    key = jax.random.PRNGKey(0)
    k_x, k_h, k_p = jax.random.split(key, 3)
    x = jax.random.normal(k_x, (B, isize), jnp.float32)
    hidden = jax.random.normal(k_h, (B, hsize), jnp.float32)
    params = init_params(k_p, isize, hsize, asize)

    pi_ref, v_ref, h_ref = _reference_forward(x, hidden, params)

    # --- f32 path (exact) ---
    prepped = prepare_params(params)                     # one-time prep
    pi, v, h_new = wnet_forward(x, hidden, prepped)
    jax.block_until_ready((pi, v, h_new))

    assert pi.shape == (B, NUM_ACTIONS) and v.shape == (B, 1) and h_new.shape == (B, hsize)
    assert jnp.allclose(pi, pi_ref, atol=1e-5, rtol=1e-5)
    assert jnp.allclose(v, v_ref, atol=1e-5, rtol=1e-5)
    assert jnp.allclose(h_new, h_ref, atol=1e-5, rtol=1e-5)

    # --- bf16 matmul-operand path (halves weight/activation HBM traffic) ---
    prepped_bf16 = prepare_params(params, compute_dtype=jnp.bfloat16)
    pi16, v16, h16 = wnet_forward(x, hidden, prepped_bf16)
    jax.block_until_ready((pi16, v16, h16))
    assert jnp.allclose(pi16, pi_ref, atol=3e-2, rtol=3e-2)
    assert jnp.allclose(v16, v_ref, atol=3e-2, rtol=3e-2)
    assert jnp.allclose(h16, h_ref, atol=3e-2, rtol=3e-2)

    print("KERNEL_OK")
</pallas_src>

<mosaic_0001>
module attributes {stable_mosaic.version = 11 : i64} {
  func.func @_wnet_kernel(%arg0: i32, %arg1: memref<8x16xf32, #tpu.memory_space<vmem>>, %arg2: memref<8x32xf32, #tpu.memory_space<vmem>>, %arg3: memref<16x32xf32, #tpu.memory_space<vmem>>, %arg4: memref<32x32xf32, #tpu.memory_space<vmem>>, %arg5: memref<1x32xf32, #tpu.memory_space<vmem>>, %arg6: memref<32x32xf32, #tpu.memory_space<vmem>>, %arg7: memref<1x32xf32, #tpu.memory_space<vmem>>, %arg8: memref<32x32xf32, #tpu.memory_space<vmem>>, %arg9: memref<1x32xf32, #tpu.memory_space<vmem>>, %arg10: memref<32x8xf32, #tpu.memory_space<vmem>>, %arg11: memref<1x8xf32, #tpu.memory_space<vmem>>, %arg12: memref<8x8xf32, #tpu.memory_space<vmem>>, %arg13: memref<8x32xf32, #tpu.memory_space<vmem>>) attributes {dimension_semantics = [#tpu.dimension_semantics<parallel>], iteration_bounds = array<i64: 1>, scalar_prefetch = 0 : i64, scratch_operands = 0 : i64, tpu.core_type = #tpu.core_type<tc>, window_params = [{transform_indices = @transform_0, window_bounds = array<i64: 8, 16>}, {transform_indices = @transform_1, window_bounds = array<i64: 8, 32>}, {pipeline_mode = #tpu.pipeline_mode<synchronous>, transform_indices = @transform_2, window_bounds = array<i64: 16, 32>}, {pipeline_mode = #tpu.pipeline_mode<synchronous>, transform_indices = @transform_3, window_bounds = array<i64: 32, 32>}, {pipeline_mode = #tpu.pipeline_mode<synchronous>, transform_indices = @transform_4, window_bounds = array<i64: 1, 32>}, {pipeline_mode = #tpu.pipeline_mode<synchronous>, transform_indices = @transform_5, window_bounds = array<i64: 32, 32>}, {pipeline_mode = #tpu.pipeline_mode<synchronous>, transform_indices = @transform_6, window_bounds = array<i64: 1, 32>}, {pipeline_mode = #tpu.pipeline_mode<synchronous>, transform_indices = @transform_7, window_bounds = array<i64: 32, 32>}, {pipeline_mode = #tpu.pipeline_mode<synchronous>, transform_indices = @transform_8, window_bounds = array<i64: 1, 32>}, {pipeline_mode = #tpu.pipeline_mode<synchronous>, transform_indices = @transform_9, window_bounds = array<i64: 32, 8>}, {pipeline_mode = #tpu.pipeline_mode<synchronous>, transform_indices = @transform_10, window_bounds = array<i64: 1, 8>}, {transform_indices = @transform_11, window_bounds = array<i64: 8, 8>}, {transform_indices = @transform_12, window_bounds = array<i64: 8, 32>}]} {
    %c0 = arith.constant 0 : index
    %c0_0 = arith.constant 0 : index
    %0 = vector.load %arg1[%c0, %c0_0] : memref<8x16xf32, #tpu.memory_space<vmem>>, vector<8x16xf32>
    %c0_1 = arith.constant 0 : index
    %c0_2 = arith.constant 0 : index
    %1 = vector.load %arg3[%c0_1, %c0_2] : memref<16x32xf32, #tpu.memory_space<vmem>>, vector<16x32xf32>
    %cst = arith.constant dense<0.000000e+00> : vector<8x32xf32>
    %2 = tpu.matmul %0, %1, %cst {dimension_numbers = #tpu.dot_dimension_numbers<[1], [0], [0], [1], [0, 0, 1, 1], [], []>} : vector<8x16xf32>, vector<16x32xf32>, vector<8x32xf32> -> vector<8x32xf32>
    %c0_3 = arith.constant 0 : index
    %c0_4 = arith.constant 0 : index
    %3 = vector.load %arg2[%c0_3, %c0_4] : memref<8x32xf32, #tpu.memory_space<vmem>>, vector<8x32xf32>
    %c0_5 = arith.constant 0 : index
    %c0_6 = arith.constant 0 : index
    %4 = vector.load %arg4[%c0_5, %c0_6] : memref<32x32xf32, #tpu.memory_space<vmem>>, vector<32x32xf32>
    %cst_7 = arith.constant dense<0.000000e+00> : vector<8x32xf32>
    %5 = tpu.matmul %3, %4, %cst_7 {dimension_numbers = #tpu.dot_dimension_numbers<[1], [0], [0], [1], [0, 0, 1, 1], [], []>} : vector<8x32xf32>, vector<32x32xf32>, vector<8x32xf32> -> vector<8x32xf32>
    %6 = arith.addf %2, %5 : vector<8x32xf32>
    %c0_8 = arith.constant 0 : index
    %c0_9 = arith.constant 0 : index
    %7 = vector.load %arg5[%c0_8, %c0_9] : memref<1x32xf32, #tpu.memory_space<vmem>>, vector<1x32xf32>
    %8 = vector.broadcast %7 : vector<1x32xf32> to vector<8x32xf32>
    %9 = arith.addf %6, %8 : vector<8x32xf32>
    %10 = math.tanh %9 : vector<8x32xf32>
    %c0_10 = arith.constant 0 : index
    %c0_11 = arith.constant 0 : index
    %11 = vector.load %arg6[%c0_10, %c0_11] : memref<32x32xf32, #tpu.memory_space<vmem>>, vector<32x32xf32>
    %cst_12 = arith.constant dense<0.000000e+00> : vector<8x32xf32>
    %12 = tpu.matmul %10, %11, %cst_12 {dimension_numbers = #tpu.dot_dimension_numbers<[1], [0], [0], [1], [0, 0, 1, 1], [], []>} : vector<8x32xf32>, vector<32x32xf32>, vector<8x32xf32> -> vector<8x32xf32>
    %c0_13 = arith.constant 0 : index
    %c0_14 = arith.constant 0 : index
    %13 = vector.load %arg7[%c0_13, %c0_14] : memref<1x32xf32, #tpu.memory_space<vmem>>, vector<1x32xf32>
    %14 = vector.broadcast %13 : vector<1x32xf32> to vector<8x32xf32>
    %15 = arith.addf %12, %14 : vector<8x32xf32>
    %16 = math.tanh %15 : vector<8x32xf32>
    %c0_15 = arith.constant 0 : index
    %c0_16 = arith.constant 0 : index
    %17 = vector.load %arg8[%c0_15, %c0_16] : memref<32x32xf32, #tpu.memory_space<vmem>>, vector<32x32xf32>
    %cst_17 = arith.constant dense<0.000000e+00> : vector<8x32xf32>
    %18 = tpu.matmul %16, %17, %cst_17 {dimension_numbers = #tpu.dot_dimension_numbers<[1], [0], [0], [1], [0, 0, 1, 1], [], []>} : vector<8x32xf32>, vector<32x32xf32>, vector<8x32xf32> -> vector<8x32xf32>
    %c0_18 = arith.constant 0 : index
    %c0_19 = arith.constant 0 : index
    %19 = vector.load %arg9[%c0_18, %c0_19] : memref<1x32xf32, #tpu.memory_space<vmem>>, vector<1x32xf32>
    %20 = vector.broadcast %19 : vector<1x32xf32> to vector<8x32xf32>
    %21 = arith.addf %18, %20 : vector<8x32xf32>
    %22 = arith.negf %21 : vector<8x32xf32>
    %23 = math.exp %22 : vector<8x32xf32>
    %cst_20 = arith.constant 1.000000e+00 : f32
    %24 = vector.broadcast %cst_20 : f32 to vector<8x32xf32>
    %25 = arith.addf %24, %23 : vector<8x32xf32>
    %26 = arith.divf %24, %25 : vector<8x32xf32>
    %27 = arith.mulf %10, %26 : vector<8x32xf32>
    %c0_21 = arith.constant 0 : index
    %c0_22 = arith.constant 0 : index
    %28 = vector.load %arg10[%c0_21, %c0_22] : memref<32x8xf32, #tpu.memory_space<vmem>>, vector<32x8xf32>
    %cst_23 = arith.constant dense<0.000000e+00> : vector<8x8xf32>
    %29 = tpu.matmul %27, %28, %cst_23 {dimension_numbers = #tpu.dot_dimension_numbers<[1], [0], [0], [1], [0, 0, 1, 1], [], []>} : vector<8x32xf32>, vector<32x8xf32>, vector<8x8xf32> -> vector<8x8xf32>
    %c0_24 = arith.constant 0 : index
    %c0_25 = arith.constant 0 : index
    %30 = vector.load %arg11[%c0_24, %c0_25] : memref<1x8xf32, #tpu.memory_space<vmem>>, vector<1x8xf32>
    %31 = vector.broadcast %30 : vector<1x8xf32> to vector<8x8xf32>
    %32 = arith.addf %29, %31 : vector<8x8xf32>
    %c0_26 = arith.constant 0 : index
    %c0_27 = arith.constant 0 : index
    %33 = vector.load %arg12[%c0_26, %c0_27] : memref<8x8xf32, #tpu.memory_space<vmem>>, vector<8x8xf32>
    tpu.vector_store %arg12[%c0_26, %c0_27], %32 {strides = array<i32>} : memref<8x8xf32, #tpu.memory_space<vmem>>, vector<8x8xf32>,
    %c0_28 = arith.constant 0 : index
    %c0_29 = arith.constant 0 : index
    %34 = vector.load %arg13[%c0_28, %c0_29] : memref<8x32xf32, #tpu.memory_space<vmem>>, vector<8x32xf32>
    tpu.vector_store %arg13[%c0_28, %c0_29], %10 {strides = array<i32>} : memref<8x32xf32, #tpu.memory_space<vmem>>, vector<8x32xf32>,
    return
  }
  func.func @transform_0(%arg0: i32) -> (i32, i32) {
    %c0_i32 = arith.constant 0 : i32
    %c0_i32_0 = arith.constant 0 : i32
    return %arg0, %c0_i32 : i32, i32
  }
  func.func @transform_1(%arg0: i32) -> (i32, i32) {
    %c0_i32 = arith.constant 0 : i32
    %c0_i32_0 = arith.constant 0 : i32
    return %arg0, %c0_i32 : i32, i32
  }
  func.func @transform_2(%arg0: i32) -> (i32, i32) {
    %c0_i32 = arith.constant 0 : i32
    %c0_i32_0 = arith.constant 0 : i32
    %c0_i32_1 = arith.constant 0 : i32
    return %c0_i32, %c0_i32_0 : i32, i32
  }
  func.func @transform_3(%arg0: i32) -> (i32, i32) {
    %c0_i32 = arith.constant 0 : i32
    %c0_i32_0 = arith.constant 0 : i32
    %c0_i32_1 = arith.constant 0 : i32
    return %c0_i32, %c0_i32_0 : i32, i32
  }
  func.func @transform_4(%arg0: i32) -> (i32, i32) {
    %c0_i32 = arith.constant 0 : i32
    %c0_i32_0 = arith.constant 0 : i32
    %c0_i32_1 = arith.constant 0 : i32
    return %c0_i32, %c0_i32_0 : i32, i32
  }
  func.func @transform_5(%arg0: i32) -> (i32, i32) {
    %c0_i32 = arith.constant 0 : i32
    %c0_i32_0 = arith.constant 0 : i32
    %c0_i32_1 = arith.constant 0 : i32
    return %c0_i32, %c0_i32_0 : i32, i32
  }
  func.func @transform_6(%arg0: i32) -> (i32, i32) {
    %c0_i32 = arith.constant 0 : i32
    %c0_i32_0 = arith.constant 0 : i32
    %c0_i32_1 = arith.constant 0 : i32
    return %c0_i32, %c0_i32_0 : i32, i32
  }
  func.func @transform_7(%arg0: i32) -> (i32, i32) {
    %c0_i32 = arith.constant 0 : i32
    %c0_i32_0 = arith.constant 0 : i32
    %c0_i32_1 = arith.constant 0 : i32
    return %c0_i32, %c0_i32_0 : i32, i32
  }
  func.func @transform_8(%arg0: i32) -> (i32, i32) {
    %c0_i32 = arith.constant 0 : i32
    %c0_i32_0 = arith.constant 0 : i32
    %c0_i32_1 = arith.constant 0 : i32
    return %c0_i32, %c0_i32_0 : i32, i32
  }
  func.func @transform_9(%arg0: i32) -> (i32, i32) {
    %c0_i32 = arith.constant 0 : i32
    %c0_i32_0 = arith.constant 0 : i32
    %c0_i32_1 = arith.constant 0 : i32
    return %c0_i32, %c0_i32_0 : i32, i32
  }
  func.func @transform_10(%arg0: i32) -> (i32, i32) {
    %c0_i32 = arith.constant 0 : i32
    %c0_i32_0 = arith.constant 0 : i32
    %c0_i32_1 = arith.constant 0 : i32
    return %c0_i32, %c0_i32_0 : i32, i32
  }
  func.func @transform_11(%arg0: i32) -> (i32, i32) {
    %c0_i32 = arith.constant 0 : i32
    %c0_i32_0 = arith.constant 0 : i32
    return %arg0, %c0_i32 : i32, i32
  }
  func.func @transform_12(%arg0: i32) -> (i32, i32) {
    %c0_i32 = arith.constant 0 : i32
    %c0_i32_0 = arith.constant 0 : i32
    return %arg0, %c0_i32 : i32, i32
  }
}

</mosaic_0001>

<llo_original>
// kernel: tpu_custom_call.1
$region0: #{tpu_custom_call.1}
  #allocation0 [shape = 'u32[]', space=smem, size = 0x4, offset = 0x4, fixed_abs, tag = 'smem constant byte address 0x4 - core index']
  #allocation1 [shape = 'u32[144,128]{1,0:T(1,128)}', space=vmem, size = 0x12000, scoped, tag = 'internal scratch']
  %s0 = inlined_call_operand.vmem [shape: f32[8,16], index: 0, kind: input, shape index: {}]
  %s1 = inlined_call_operand.hbm [shape: f32[8,32], index: 1, kind: input, shape index: {}]
  %s2 = inlined_call_operand.hbm [shape: f32[16,32], index: 2, kind: input, shape index: {}]
  %s3 = inlined_call_operand.vmem [shape: f32[32,32], index: 3, kind: input, shape index: {}]
  %s4 = inlined_call_operand.vmem [shape: f32[1,32], index: 4, kind: input, shape index: {}]
  %s5 = inlined_call_operand.hbm [shape: f32[32,32], index: 5, kind: input, shape index: {}]
  %s6 = inlined_call_operand.vmem [shape: f32[1,32], index: 6, kind: input, shape index: {}]
  %s7 = inlined_call_operand.hbm [shape: f32[32,32], index: 7, kind: input, shape index: {}]
  %s8 = inlined_call_operand.vmem [shape: f32[1,32], index: 8, kind: input, shape index: {}]
  %s9 = inlined_call_operand.vmem [shape: f32[32,8], index: 9, kind: input, shape index: {}]
  %s10 = inlined_call_operand.vmem [shape: f32[1,8], index: 10, kind: input, shape index: {}]
  %s11 = inlined_call_operand.hbm [shape: f32[8,8], index: 11, kind: output, shape index: {0}]
  %s12 = inlined_call_operand.hbm [shape: f32[8,32], index: 12, kind: output, shape index: {1}]
  %13 = xla_tuple %s11, %s12
  %s14 = sld [smem:[#allocation0]]
  $region78: #{tpu_custom_call.1} parent=0
    _
  %s16 = ssub.s32 1, %s14
  %s17 = scalar_select 0, %s16, %s14
  $region1: #{tpu_custom_call.1} parent=0
    #allocation2 [shape = 'u8[4096]{0}', space=vmem, size = 0x1000, scoped, tag = 'input window, operand 1, single buffered']
    #allocation3 [shape = 's32[1]{0}', space=sflag, size = 0x4, scoped, tag = 'scoped memory for tpu_custom_call.1']
    #allocation4 [shape = 's32[1]{0}', space=sflag, size = 0x4, scoped, tag = 'scoped memory for tpu_custom_call.1']
    #allocation5 [shape = 'u8[8192]{0}', space=vmem, size = 0x2000, scoped, tag = 'input window, operand 2, single buffered']
    #allocation6 [shape = 's32[1]{0}', space=sflag, size = 0x4, scoped, tag = 'scoped memory for tpu_custom_call.1']
    #allocation7 [shape = 'u8[16384]{0}', space=vmem, size = 0x4000, scoped, tag = 'input window, operand 5, single buffered']
    #allocation8 [shape = 'u8[16384]{0}', space=vmem, size = 0x4000, scoped, tag = 'input window, operand 7, single buffered']
    #allocation9 [shape = 's32[1]{0}', space=sflag, size = 0x4, scoped, tag = 'scoped memory for tpu_custom_call.1']
    #allocation10 [shape = 'u8[4096]{0}', space=vmem, size = 0x1000, scoped, tag = 'output window, operand 0, single buffered']
    #allocation11 [shape = 'u8[4096]{0}', space=vmem, size = 0x1000, scoped, tag = 'output window, operand 1, single buffered']
    #allocation12 [shape = 's32[1]{0}', space=sflag, size = 0x4, scoped, tag = 'scoped memory for tpu_custom_call.1']
    %18 = vsyncpa [#allocation3], 0
    %19 = vsyncpa [#allocation6], 0
    %20 = vsyncpa [#allocation9], 0
    %21 = vsyncpa [#allocation4], 0
    %22 = vsyncpa [#allocation12], 0
    // Predicated region
    $region2: #{tpu_custom_call.1} parent=1 // pred_check
      _
    $region3: #{tpu_custom_call.1} parent=1 // pred_check_branch
      %24 = sbr.rel (0) target = $region5
    $region4: #{tpu_custom_call.1} parent=1 // pred_region
      _
    $region5: #{tpu_custom_call.1} parent=1 // pred_fallthru
      _
    // Predicated region
    $region6: #{tpu_custom_call.1} parent=1 // pred_check
      _
    $region7: #{tpu_custom_call.1} parent=1 // pred_check_branch
      %26 = sbr.rel (0) target = $region9
    $region8: #{tpu_custom_call.1} parent=1 // pred_region
      %s28 = ssub.s32 128, 128
      %29 = vsyncadd [#allocation3], %s28
      %s31 = sshll.u32 [#allocation2], 4
      %s32 = int_to_ptr.vmem [resolvable:$true] %s31
      %34 = dma.hbm_to_vmem [thread:$0]  %s1, 128, %s32, [#allocation3]
    $region9: #{tpu_custom_call.1} parent=1 // pred_fallthru
      _
    // Predicated region
    $region10: #{tpu_custom_call.1} parent=1 // pred_check
      _
    $region11: #{tpu_custom_call.1} parent=1 // pred_check_branch
      %36 = sbr.rel (0) target = $region13
    $region12: #{tpu_custom_call.1} parent=1 // pred_region
      %s38 = ssub.s32 256, 256
      %39 = vsyncadd [#allocation6], %s38
      %s40 = sshll.u32 [#allocation5], 4
      %s41 = int_to_ptr.vmem [resolvable:$true] %s40
      %46 = dma.hbm_to_vmem [thread:$0]  %s2, 256, %s41, [#allocation6], 128, 128, 8
    $region13: #{tpu_custom_call.1} parent=1 // pred_fallthru
      _
    // Predicated region
    $region14: #{tpu_custom_call.1} parent=1 // pred_check
      _
    $region15: #{tpu_custom_call.1} parent=1 // pred_check_branch
      %48 = sbr.rel (0) target = $region17
    $region16: #{tpu_custom_call.1} parent=1 // pred_region
      _
    $region17: #{tpu_custom_call.1} parent=1 // pred_fallthru
      _
    // Predicated region
    $region18: #{tpu_custom_call.1} parent=1 // pred_check
      _
    $region19: #{tpu_custom_call.1} parent=1 // pred_check_branch
      %50 = sbr.rel (0) target = $region21
    $region20: #{tpu_custom_call.1} parent=1 // pred_region
      _
    $region21: #{tpu_custom_call.1} parent=1 // pred_fallthru
      _
    // Predicated region
    $region22: #{tpu_custom_call.1} parent=1 // pred_check
      _
    $region23: #{tpu_custom_call.1} parent=1 // pred_check_branch
      %52 = sbr.rel (0) target = $region25
    $region24: #{tpu_custom_call.1} parent=1 // pred_region
      %s54 = ssub.s32 512, 512
      %55 = vsyncadd [#allocation6], %s54
      %s56 = sshll.u32 [#allocation7], 4
      %s57 = int_to_ptr.vmem [resolvable:$true] %s56
      %62 = dma.hbm_to_vmem [thread:$0]  %s5, 512, %s57, [#allocation6], 128, 128, 8
    $region25: #{tpu_custom_call.1} parent=1 // pred_fallthru
      _
    // Predicated region
    $region26: #{tpu_custom_call.1} parent=1 // pred_check
      _
    $region27: #{tpu_custom_call.1} parent=1 // pred_check_branch
      %64 = sbr.rel (0) target = $region29
    $region28: #{tpu_custom_call.1} parent=1 // pred_region
      _
    $region29: #{tpu_custom_call.1} parent=1 // pred_fallthru
      _
    // Predicated region
    $region30: #{tpu_custom_call.1} parent=1 // pred_check
      _
    $region31: #{tpu_custom_call.1} parent=1 // pred_check_branch
      %66 = sbr.rel (0) target = $region33
    $region32: #{tpu_custom_call.1} parent=1 // pred_region
      %s68 = ssub.s32 512, 512
      %69 = vsyncadd [#allocation9], %s68
      %s70 = sshll.u32 [#allocation8], 4
      %s71 = int_to_ptr.vmem [resolvable:$true] %s70
      %76 = dma.hbm_to_vmem [thread:$0]  %s7, 512, %s71, [#allocation9], 128, 128, 8
    $region33: #{tpu_custom_call.1} parent=1 // pred_fallthru
      _
    // Predicated region
    $region34: #{tpu_custom_call.1} parent=1 // pred_check
      _
    $region35: #{tpu_custom_call.1} parent=1 // pred_check_branch
      %78 = sbr.rel (0) target = $region37
    $region36: #{tpu_custom_call.1} parent=1 // pred_region
      _
    $region37: #{tpu_custom_call.1} parent=1 // pred_fallthru
      _
    // Predicated region
    $region38: #{tpu_custom_call.1} parent=1 // pred_check
      _
    $region39: #{tpu_custom_call.1} parent=1 // pred_check_branch
      %80 = sbr.rel (0) target = $region41
    $region40: #{tpu_custom_call.1} parent=1 // pred_region
      _
    $region41: #{tpu_custom_call.1} parent=1 // pred_fallthru
      _
    // Predicated region
    $region42: #{tpu_custom_call.1} parent=1 // pred_check
      _
    $region43: #{tpu_custom_call.1} parent=1 // pred_check_branch
      %82 = sbr.rel (0) target = $region45
    $region44: #{tpu_custom_call.1} parent=1 // pred_region
      _
    $region45: #{tpu_custom_call.1} parent=1 // pred_fallthru
      _
    // Predicated region
    $region46: #{tpu_custom_call.1} parent=1 // pred_check
      _
    $region47: #{tpu_custom_call.1} parent=1 // pred_check_branch
      %84 = sbr.rel (0) target = $region49
    $region48: #{tpu_custom_call.1} parent=1 // pred_region
      %85 = dma.done [#allocation3], 128
    $region49: #{tpu_custom_call.1} parent=1 // pred_fallthru
      _
    // Predicated region
    $region50: #{tpu_custom_call.1} parent=1 // pred_check
      _
    $region51: #{tpu_custom_call.1} parent=1 // pred_check_branch
      %87 = sbr.rel (0) target = $region53
    $region52: #{tpu_custom_call.1} parent=1 // pred_region
      %88 = dma.done [#allocation6], 256
    $region53: #{tpu_custom_call.1} parent=1 // pred_fallthru
      _
    // Predicated region
    $region54: #{tpu_custom_call.1} parent=1 // pred_check
      _
    $region55: #{tpu_custom_call.1} parent=1 // pred_check_branch
      %90 = sbr.rel (0) target = $region57
    $region56: #{tpu_custom_call.1} parent=1 // pred_region
      %91 = dma.done [#allocation6], 512
    $region57: #{tpu_custom_call.1} parent=1 // pred_fallthru
      _
    // Predicated region
    $region58: #{tpu_custom_call.1} parent=1 // pred_check
      _
    $region59: #{tpu_custom_call.1} parent=1 // pred_check_branch
      %93 = sbr.rel (0) target = $region61
    $region60: #{tpu_custom_call.1} parent=1 // pred_region
      %94 = dma.done [#allocation9], 512
    $region61: #{tpu_custom_call.1} parent=1 // pred_fallthru
      _
    %v95 = vld [vmem:[%s0] sm:$0xff]
    %v96 = vld [vmem:[#allocation5] sm:$0xff]
    %v97 = vld [vmem:[#allocation5 + $0x8] sm:$0xff]
    %v98 = vld [vmem:[#allocation2] sm:$0xff]
    %v99 = vld [vmem:[%s3] sm:$0xff]
    %v100 = vld [vmem:[%s3 + $0x8] sm:$0xff]
    %v101 = vld [vmem:[%s3 + $0x10] sm:$0xff]
    %v102 = vld [vmem:[%s3 + $0x18] sm:$0xff]
    %vm103 = vcmask 261120
    %v105 = vsel %vm103, %v98, 0
    %107 = vmatprep.subr.mxu0 0.0
    %108 = vmatpush1.msra.mxu0 0.0
    %109 = vmatprep.subr.mxu0 0.0
    %110 = vmatpush1.msra.mxu0 0.0
    %111 = vmatprep.subr.mxu0 0.0
    %112 = vmatpush1.msra.mxu0 0.0
    %113 = vmatprep.subr.mxu0 0.0
    %114 = vmatpush1.msra.mxu0 0.0
    %115 = vmatprep.subr.mxu0 0.0
    %116 = vmatpush1.msra.mxu0 0.0
    %117 = vmatprep.subr.mxu0 0.0
    %118 = vmatpush1.msra.mxu0 0.0
    %119 = vmatprep.subr.mxu0 0.0
    %120 = vmatpush1.msra.mxu0 0.0
    %121 = vmatprep.subr.mxu0 0.0
    %122 = vmatpush1.msra.mxu0 0.0
    %123 = vmatprep.subr.mxu0 0.0
    %124 = vmatpush1.msra.mxu0 0.0
    %125 = vmatprep.subr.mxu0 0.0
    %126 = vmatpush1.msra.mxu0 0.0
    %127 = vmatprep.subr.mxu0 0.0
    %128 = vmatpush1.msra.mxu0 0.0
    %129 = vmatprep.subr.mxu0 0.0
    %130 = vmatpush1.msra.mxu0 0.0
    %131 = vmatprep.subr.mxu0 0.0
    %132 = vmatpush1.msra.mxu0 %v102
    %133 = vmatprep.subr.mxu0 0.0
    %134 = vmatpush1.msra.mxu0 %v101
    %135 = vmatprep.subr.mxu0 0.0
    %136 = vmatpush1.msra.mxu0 %v100
    %137 = vmatprep.subr.mxu0 0.0
    %138 = vmatpush1.msra.mxu0 %v99
    %139 = vmatprep.subr.mxu0 0.0
    %140 = vmatpush2.msra.mxu0 0.0
    %141 = vmatprep.subr.mxu0 0.0
    %142 = vmatpush2.msra.mxu0 0.0
    %143 = vmatprep.subr.mxu0 0.0
    %144 = vmatpush2.msra.mxu0 0.0
    %145 = vmatprep.subr.mxu0 0.0
    %146 = vmatpush2.msra.mxu0 0.0
    %147 = vmatprep.subr.mxu0 0.0
    %148 = vmatpush2.msra.mxu0 0.0
    %149 = vmatprep.subr.mxu0 0.0
    %150 = vmatpush2.msra.mxu0 0.0
    %151 = vmatprep.subr.mxu0 0.0
    %152 = vmatpush2.msra.mxu0 0.0
    %153 = vmatprep.subr.mxu0 0.0
    %154 = vmatpush2.msra.mxu0 0.0
    %155 = vmatprep.subr.mxu0 0.0
    %156 = vmatpush2.msra.mxu0 0.0
    %157 = vmatprep.subr.mxu0 0.0
    %158 = vmatpush2.msra.mxu0 0.0
    %159 = vmatprep.subr.mxu0 0.0
    %160 = vmatpush2.msra.mxu0 0.0
    %161 = vmatprep.subr.mxu0 0.0
    %162 = vmatpush2.msra.mxu0 0.0
    %163 = vmatprep.subr.mxu0 0.0
    %164 = vmatpush2.msra.mxu0 0.0
    %165 = vmatprep.subr.mxu0 0.0
    %166 = vmatpush2.msra.mxu0 0.0
    %167 = vmatprep.subr.mxu0 0.0
    %168 = vmatpush2.msra.mxu0 0.0
    %169 = vmatprep.subr.mxu0 0.0
    %170 = vmatpush2.msra.mxu0 0.0
    %171 = vmatprep.mubr.f32.mxu0 0.0
    %172 = vmatmul.mubr.f32.gmra.mxu0 %v105
    %v173 = vpop.f32.mrf.mxu0
    %v174 = vadd.f32 0.0, %v173
    %v175 = vpop.f32.mrf.mxu0
    %176 = vdwg.mxu0
    %vm177 = vcmask 130048
    %v179 = vsel %vm177, %v95, 0
    %181 = vmatprep.subr.mxu0 0.0
    %182 = vmatpush1.msra.mxu0 0.0
    %183 = vmatprep.subr.mxu0 0.0
    %184 = vmatpush1.msra.mxu0 0.0
    %185 = vmatprep.subr.mxu0 0.0
    %186 = vmatpush1.msra.mxu0 0.0
    %187 = vmatprep.subr.mxu0 0.0
    %188 = vmatpush1.msra.mxu0 0.0
    %189 = vmatprep.subr.mxu0 0.0
    %190 = vmatpush1.msra.mxu0 0.0
    %191 = vmatprep.subr.mxu0 0.0
    %192 = vmatpush1.msra.mxu0 0.0
    %193 = vmatprep.subr.mxu0 0.0
    %194 = vmatpush1.msra.mxu0 0.0
    %195 = vmatprep.subr.mxu0 0.0
    %196 = vmatpush1.msra.mxu0 0.0
    %197 = vmatprep.subr.mxu0 0.0
    %198 = vmatpush1.msra.mxu0 0.0
    %199 = vmatprep.subr.mxu0 0.0
    %200 = vmatpush1.msra.mxu0 0.0
    %201 = vmatprep.subr.mxu0 0.0
    %202 = vmatpush1.msra.mxu0 0.0
    %203 = vmatprep.subr.mxu0 0.0
    %204 = vmatpush1.msra.mxu0 0.0
    %205 = vmatprep.subr.mxu0 0.0
    %206 = vmatpush1.msra.mxu0 0.0
    %207 = vmatprep.subr.mxu0 0.0
    %208 = vmatpush1.msra.mxu0 0.0
    %209 = vmatprep.subr.mxu0 0.0
    %210 = vmatpush1.msra.mxu0 %v97
    %211 = vmatprep.subr.mxu0 0.0
    %212 = vmatpush1.msra.mxu0 %v96
    %213 = vmatprep.subr.mxu0 0.0
    %214 = vmatpush2.msra.mxu0 0.0
    %215 = vmatprep.subr.mxu0 0.0
    %216 = vmatpush2.msra.mxu0 0.0
    %217 = vmatprep.subr.mxu0 0.0
    %218 = vmatpush2.msra.mxu0 0.0
    %219 = vmatprep.subr.mxu0 0.0
    %220 = vmatpush2.msra.mxu0 0.0
    %221 = vmatprep.subr.mxu0 0.0
    %222 = vmatpush2.msra.mxu0 0.0
    %223 = vmatprep.subr.mxu0 0.0
    %224 = vmatpush2.msra.mxu0 0.0
    %225 = vmatprep.subr.mxu0 0.0
    %226 = vmatpush2.msra.mxu0 0.0
    %227 = vmatprep.subr.mxu0 0.0
    %228 = vmatpush2.msra.mxu0 0.0
    %229 = vmatprep.subr.mxu0 0.0
    %230 = vmatpush2.msra.mxu0 0.0
    %231 = vmatprep.subr.mxu0 0.0
    %232 = vmatpush2.msra.mxu0 0.0
    %233 = vmatprep.subr.mxu0 0.0
    %234 = vmatpush2.msra.mxu0 0.0
    %235 = vmatprep.subr.mxu0 0.0
    %236 = vmatpush2.msra.mxu0 0.0
    %237 = vmatprep.subr.mxu0 0.0
    %238 = vmatpush2.msra.mxu0 0.0
    %239 = vmatprep.subr.mxu0 0.0
    %240 = vmatpush2.msra.mxu0 0.0
    %241 = vmatprep.subr.mxu0 0.0
    %242 = vmatpush2.msra.mxu0 0.0
    %243 = vmatprep.subr.mxu0 0.0
    %244 = vmatpush2.msra.mxu0 0.0
    %245 = vmatprep.mubr.f32.mxu0 0.0
    %246 = vmatmul.mubr.f32.gmra.mxu0 %v179
    %v247 = vpop.f32.mrf.mxu0
    %v248 = vadd.f32 %v174, %v247
    %v249 = vpop.f32.mrf.mxu0
    %250 = vdwg.mxu0
    %v251 = vld [vmem:[%s4] sm:$0x1]
    %v253 = vlaneseq
    %v254 = vshrl.u32 %v253, 7
    %v255 = vsub.s32 0, %v254
    %v256 = vrot.slane %v251, %v255
    %v258 = vadd.f32 %v248, %v256
    %v259 = vtanh.pop %v258
    %v260 = vld [vmem:[#allocation7] sm:$0xff]
    %v261 = vld [vmem:[#allocation7 + $0x8] sm:$0xff]
    %v262 = vld [vmem:[#allocation7 + $0x10] sm:$0xff]
    %v263 = vld [vmem:[#allocation7 + $0x18] sm:$0xff]
    %v264 = vld [vmem:[%s6] sm:$0x1]
    %v266 = vlaneseq
    %v267 = vshrl.u32 %v266, 7
    %v268 = vsub.s32 0, %v267
    %v269 = vrot.slane %v264, %v268
    %v272 = vsel %vm103, %v259, 0
    %274 = vmatprep.subr.mxu0 0.0
    %275 = vmatpush1.msra.mxu0 0.0
    %276 = vmatprep.subr.mxu0 0.0
    %277 = vmatpush1.msra.mxu0 0.0
    %278 = vmatprep.subr.mxu0 0.0
    %279 = vmatpush1.msra.mxu0 0.0
    %280 = vmatprep.subr.mxu0 0.0
    %281 = vmatpush1.msra.mxu0 0.0
    %282 = vmatprep.subr.mxu0 0.0
    %283 = vmatpush1.msra.mxu0 0.0
    %284 = vmatprep.subr.mxu0 0.0
    %285 = vmatpush1.msra.mxu0 0.0
    %286 = vmatprep.subr.mxu0 0.0
    %287 = vmatpush1.msra.mxu0 0.0
    %288 = vmatprep.subr.mxu0 0.0
    %289 = vmatpush1.msra.mxu0 0.0
    %290 = vmatprep.subr.mxu0 0.0
    %291 = vmatpush1.msra.mxu0 0.0
    %292 = vmatprep.subr.mxu0 0.0
    %293 = vmatpush1.msra.mxu0 0.0
    %294 = vmatprep.subr.mxu0 0.0
    %295 = vmatpush1.msra.mxu0 0.0
    %296 = vmatprep.subr.mxu0 0.0
    %297 = vmatpush1.msra.mxu0 0.0
    %298 = vmatprep.subr.mxu0 0.0
    %299 = vmatpush1.msra.mxu0 %v263
    %300 = vmatprep.subr.mxu0 0.0
    %301 = vmatpush1.msra.mxu0 %v262
    %302 = vmatprep.subr.mxu0 0.0
    %303 = vmatpush1.msra.mxu0 %v261
    %304 = vmatprep.subr.mxu0 0.0
    %305 = vmatpush1.msra.mxu0 %v260
    %306 = vmatprep.subr.mxu0 0.0
    %307 = vmatpush2.msra.mxu0 0.0
    %308 = vmatprep.subr.mxu0 0.0
    %309 = vmatpush2.msra.mxu0 0.0
    %310 = vmatprep.subr.mxu0 0.0
    %311 = vmatpush2.msra.mxu0 0.0
    %312 = vmatprep.subr.mxu0 0.0
    %313 = vmatpush2.msra.mxu0 0.0
    %314 = vmatprep.subr.mxu0 0.0
    %315 = vmatpush2.msra.mxu0 0.0
    %316 = vmatprep.subr.mxu0 0.0
    %317 = vmatpush2.msra.mxu0 0.0
    %318 = vmatprep.subr.mxu0 0.0
    %319 = vmatpush2.msra.mxu0 0.0
    %320 = vmatprep.subr.mxu0 0.0
    %321 = vmatpush2.msra.mxu0 0.0
    %322 = vmatprep.subr.mxu0 0.0
    %323 = vmatpush2.msra.mxu0 0.0
    %324 = vmatprep.subr.mxu0 0.0
    %325 = vmatpush2.msra.mxu0 0.0
    %326 = vmatprep.subr.mxu0 0.0
    %327 = vmatpush2.msra.mxu0 0.0
    %328 = vmatprep.subr.mxu0 0.0
    %329 = vmatpush2.msra.mxu0 0.0
    %330 = vmatprep.subr.mxu0 0.0
    %331 = vmatpush2.msra.mxu0 0.0
    %332 = vmatprep.subr.mxu0 0.0
    %333 = vmatpush2.msra.mxu0 0.0
    %334 = vmatprep.subr.mxu0 0.0
    %335 = vmatpush2.msra.mxu0 0.0
    %336 = vmatprep.subr.mxu0 0.0
    %337 = vmatpush2.msra.mxu0 0.0
    %338 = vmatprep.mubr.f32.mxu0 0.0
    %339 = vmatmul.mubr.f32.gmra.mxu0 %v272
    %v340 = vpop.f32.mrf.mxu0
    %v341 = vadd.f32 %v269, %v340
    %v342 = vpop.f32.mrf.mxu0
    %343 = vdwg.mxu0
    %v344 = vtanh.pop %v341
    %v345 = vld [vmem:[#allocation8] sm:$0xff]
    %v346 = vld [vmem:[#allocation8 + $0x8] sm:$0xff]
    %v347 = vld [vmem:[#allocation8 + $0x10] sm:$0xff]
    %v348 = vld [vmem:[#allocation8 + $0x18] sm:$0xff]
    %v349 = vld [vmem:[%s8] sm:$0x1]
    %v351 = vlaneseq
    %v352 = vshrl.u32 %v351, 7
    %v353 = vsub.s32 0, %v352
    %v354 = vrot.slane %v349, %v353
    %v357 = vsel %vm103, %v344, 0
    %359 = vmatprep.subr.mxu0 0.0
    %360 = vmatpush1.msra.mxu0 0.0
    %361 = vmatprep.subr.mxu0 0.0
    %362 = vmatpush1.msra.mxu0 0.0
    %363 = vmatprep.subr.mxu0 0.0
    %364 = vmatpush1.msra.mxu0 0.0
    %365 = vmatprep.subr.mxu0 0.0
    %366 = vmatpush1.msra.mxu0 0.0
    %367 = vmatprep.subr.mxu0 0.0
    %368 = vmatpush1.msra.mxu0 0.0
    %369 = vmatprep.subr.mxu0 0.0
    %370 = vmatpush1.msra.mxu0 0.0
    %371 = vmatprep.subr.mxu0 0.0
    %372 = vmatpush1.msra.mxu0 0.0
    %373 = vmatprep.subr.mxu0 0.0
    %374 = vmatpush1.msra.mxu0 0.0
    %375 = vmatprep.subr.mxu0 0.0
    %376 = vmatpush1.msra.mxu0 0.0
    %377 = vmatprep.subr.mxu0 0.0
    %378 = vmatpush1.msra.mxu0 0.0
    %379 = vmatprep.subr.mxu0 0.0
    %380 = vmatpush1.msra.mxu0 0.0
    %381 = vmatprep.subr.mxu0 0.0
    %382 = vmatpush1.msra.mxu0 0.0
    %383 = vmatprep.subr.mxu0 0.0
    %384 = vmatpush1.msra.mxu0 %v348
    %385 = vmatprep.subr.mxu0 0.0
    %386 = vmatpush1.msra.mxu0 %v347
    %387 = vmatprep.subr.mxu0 0.0
    %388 = vmatpush1.msra.mxu0 %v346
    %389 = vmatprep.subr.mxu0 0.0
    %390 = vmatpush1.msra.mxu0 %v345
    %391 = vmatprep.subr.mxu0 0.0
    %392 = vmatpush2.msra.mxu0 0.0
    %393 = vmatprep.subr.mxu0 0.0
    %394 = vmatpush2.msra.mxu0 0.0
    %395 = vmatprep.subr.mxu0 0.0
    %396 = vmatpush2.msra.mxu0 0.0
    %397 = vmatprep.subr.mxu0 0.0
    %398 = vmatpush2.msra.mxu0 0.0
    %399 = vmatprep.subr.mxu0 0.0
    %400 = vmatpush2.msra.mxu0 0.0
    %401 = vmatprep.subr.mxu0 0.0
    %402 = vmatpush2.msra.mxu0 0.0
    %403 = vmatprep.subr.mxu0 0.0
    %404 = vmatpush2.msra.mxu0 0.0
    %405 = vmatprep.subr.mxu0 0.0
    %406 = vmatpush2.msra.mxu0 0.0
    %407 = vmatprep.subr.mxu0 0.0
    %408 = vmatpush2.msra.mxu0 0.0
    %409 = vmatprep.subr.mxu0 0.0
    %410 = vmatpush2.msra.mxu0 0.0
    %411 = vmatprep.subr.mxu0 0.0
    %412 = vmatpush2.msra.mxu0 0.0
    %413 = vmatprep.subr.mxu0 0.0
    %414 = vmatpush2.msra.mxu0 0.0
    %415 = vmatprep.subr.mxu0 0.0
    %416 = vmatpush2.msra.mxu0 0.0
    %417 = vmatprep.subr.mxu0 0.0
    %418 = vmatpush2.msra.mxu0 0.0
    %419 = vmatprep.subr.mxu0 0.0
    %420 = vmatpush2.msra.mxu0 0.0
    %421 = vmatprep.subr.mxu0 0.0
    %422 = vmatpush2.msra.mxu0 0.0
    %423 = vmatprep.mubr.f32.mxu0 0.0
    %424 = vmatmul.mubr.f32.gmra.mxu0 %v357
    %v425 = vpop.f32.mrf.mxu0
    %v426 = vadd.f32 %v354, %v425
    %v427 = vpop.f32.mrf.mxu0
    %428 = vdwg.mxu0
    %v429 = vxor.u32 %v426, 2147483648
    %v430 = vmul.f32 %v429, 1.442695
    %v431 = vpow.pop %v430
    %v432 = vadd.f32 %v431, 1.0
    %v433 = vrcp.pop %v432
    %v434 = vmul.f32 1.0, %v433
    %v435 = vmul.f32 %v259, %v434
    %v436 = vld [vmem:[%s9] sm:$0xff]
    %v437 = vld [vmem:[%s9 + $0x8] sm:$0xff]
    %v438 = vld [vmem:[%s9 + $0x10] sm:$0xff]
    %v439 = vld [vmem:[%s9 + $0x18] sm:$0xff]
    %v440 = vld [vmem:[%s10] sm:$0x1]
    %v442 = vlaneseq
    %v443 = vshrl.u32 %v442, 7
    %v444 = vsub.s32 0, %v443
    %v445 = vrot.slane %v440, %v444
    %v448 = vsel %vm103, %v435, 0
    %450 = vmatprep.subr.mxu0 0.0
    %451 = vmatpush1.msra.mxu0 0.0
    %452 = vmatprep.subr.mxu0 0.0
    %453 = vmatpush1.msra.mxu0 0.0
    %454 = vmatprep.subr.mxu0 0.0
    %455 = vmatpush1.msra.mxu0 0.0
    %456 = vmatprep.subr.mxu0 0.0
    %457 = vmatpush1.msra.mxu0 0.0
    %458 = vmatprep.subr.mxu0 0.0
    %459 = vmatpush1.msra.mxu0 0.0
    %460 = vmatprep.subr.mxu0 0.0
    %461 = vmatpush1.msra.mxu0 0.0
    %462 = vmatprep.subr.mxu0 0.0
    %463 = vmatpush1.msra.mxu0 0.0
    %464 = vmatprep.subr.mxu0 0.0
    %465 = vmatpush1.msra.mxu0 0.0
    %466 = vmatprep.subr.mxu0 0.0
    %467 = vmatpush1.msra.mxu0 0.0
    %468 = vmatprep.subr.mxu0 0.0
    %469 = vmatpush1.msra.mxu0 0.0
    %470 = vmatprep.subr.mxu0 0.0
    %471 = vmatpush1.msra.mxu0 0.0
    %472 = vmatprep.subr.mxu0 0.0
    %473 = vmatpush1.msra.mxu0 0.0
    %474 = vmatprep.subr.mxu0 0.0
    %475 = vmatpush1.msra.mxu0 %v439
    %476 = vmatprep.subr.mxu0 0.0
    %477 = vmatpush1.msra.mxu0 %v438
    %478 = vmatprep.subr.mxu0 0.0
    %479 = vmatpush1.msra.mxu0 %v437
    %480 = vmatprep.subr.mxu0 0.0
    %481 = vmatpush1.msra.mxu0 %v436
    %482 = vmatprep.subr.mxu0 0.0
    %483 = vmatpush2.msra.mxu0 0.0
    %484 = vmatprep.subr.mxu0 0.0
    %485 = vmatpush2.msra.mxu0 0.0
    %486 = vmatprep.subr.mxu0 0.0
    %487 = vmatpush2.msra.mxu0 0.0
    %488 = vmatprep.subr.mxu0 0.0
    %489 = vmatpush2.msra.mxu0 0.0
    %490 = vmatprep.subr.mxu0 0.0
    %491 = vmatpush2.msra.mxu0 0.0
    %492 = vmatprep.subr.mxu0 0.0
    %493 = vmatpush2.msra.mxu0 0.0
    %494 = vmatprep.subr.mxu0 0.0
    %495 = vmatpush2.msra.mxu0 0.0
    %496 = vmatprep.subr.mxu0 0.0
    %497 = vmatpush2.msra.mxu0 0.0
    %498 = vmatprep.subr.mxu0 0.0
    %499 = vmatpush2.msra.mxu0 0.0
    %500 = vmatprep.subr.mxu0 0.0
    %501 = vmatpush2.msra.mxu0 0.0
    %502 = vmatprep.subr.mxu0 0.0
    %503 = vmatpush2.msra.mxu0 0.0
    %504 = vmatprep.subr.mxu0 0.0
    %505 = vmatpush2.msra.mxu0 0.0
    %506 = vmatprep.subr.mxu0 0.0
    %507 = vmatpush2.msra.mxu0 0.0
    %508 = vmatprep.subr.mxu0 0.0
    %509 = vmatpush2.msra.mxu0 0.0
    %510 = vmatprep.subr.mxu0 0.0
    %511 = vmatpush2.msra.mxu0 0.0
    %512 = vmatprep.subr.mxu0 0.0
    %513 = vmatpush2.msra.mxu0 0.0
    %514 = vmatprep.mubr.f32.mxu0 0.0
    %515 = vmatmul.mubr.f32.gmra.mxu0 %v448
    %v516 = vpop.f32.mrf.mxu0
    %v517 = vadd.f32 %v445, %v516
    %v518 = vpop.f32.mrf.mxu0
    %519 = vdwg.mxu0
    %vm520 = vcmask 64512
    %521 = vst.msk [vmem:[#allocation10] sm:$0xff] %vm520, %v517
    %522 = vst.msk [vmem:[#allocation11] sm:$0xff] %vm103, %v259
    // Predicated region
    $region62: #{tpu_custom_call.1} parent=1 // pred_check
      _
    $region63: #{tpu_custom_call.1} parent=1 // pred_check_branch
      %524 = sbr.rel (0) target = $region65
    $region64: #{tpu_custom_call.1} parent=1 // pred_region
      %s526 = ssub.s32 128, 128
      %527 = vsyncadd [#allocation4], %s526
      %s529 = sshll.u32 [#allocation10], 4
      %s530 = int_to_ptr.vmem [resolvable:$true] %s529
      %532 = dma.vmem_to_hbm [thread:$0]  %s530, 128, %s11, [#allocation4]
    $region65: #{tpu_custom_call.1} parent=1 // pred_fallthru
      _
    // Predicated region
    $region66: #{tpu_custom_call.1} parent=1 // pred_check
      _
    $region67: #{tpu_custom_call.1} parent=1 // pred_check_branch
      %534 = sbr.rel (0) target = $region69
    $region68: #{tpu_custom_call.1} parent=1 // pred_region
      %s536 = ssub.s32 128, 128
      %537 = vsyncadd [#allocation12], %s536
      %s539 = sshll.u32 [#allocation11], 4
      %s540 = int_to_ptr.vmem [resolvable:$true] %s539
      %542 = dma.vmem_to_hbm [thread:$0]  %s540, 128, %s12, [#allocation12]
    $region69: #{tpu_custom_call.1} parent=1 // pred_fallthru
      _
    // Predicated region
    $region70: #{tpu_custom_call.1} parent=1 // pred_check
      _
    $region71: #{tpu_custom_call.1} parent=1 // pred_check_branch
      %544 = sbr.rel (0) target = $region73
    $region72: #{tpu_custom_call.1} parent=1 // pred_region
      %545 = dma.done [#allocation4], 128
    $region73: #{tpu_custom_call.1} parent=1 // pred_fallthru
      _
    // Predicated region
    $region74: #{tpu_custom_call.1} parent=1 // pred_check
      _
    $region75: #{tpu_custom_call.1} parent=1 // pred_check_branch
      %547 = sbr.rel (0) target = $region77
    $region76: #{tpu_custom_call.1} parent=1 // pred_region
      %548 = dma.done [#allocation12], 128
    $region77: #{tpu_custom_call.1} parent=1 // pred_fallthru
      _
    %549 = vsyncpa [#allocation3], 1
    %550 = vsyncpa [#allocation6], 1
    %551 = vsyncpa [#allocation9], 1
    %552 = vsyncpa [#allocation4], 1
    %553 = vsyncpa [#allocation12], 1

</llo_original>
